<compile_context>
chip_gen: v6e
topology: v6e:2x2x1
jax: 0.10.0
libtpu: 0.0.40
codegen_flags: <defaults>
</compile_context>

<pallas_src>
import numpy as np

import jax
import jax.numpy as jnp
from jax import lax
from jax.experimental import pallas as pl
from jax.experimental.pallas import tpu as pltpu

_LANES = 128
_SUBLANES = 8


# ------------------------------ fused Pallas kernel ------------------------------ #

def _make_fused_tcn_kernel(meta):
    """meta holds only trace-time constants: shifts and (offset, rows, cols) slots."""
    NL = meta["NL"]
    blocks = meta["blocks"]
    head = meta["head"]

    def _ld(c_ref, entry):
        off, r, c = entry                       # static python ints -> free ref view
        return c_ref[off:off + r, :c]

    def kernel(x_ref, c_ref, o_ref):
        h = x_ref[...].astype(jnp.float32)      # (N*L, C0), batch folded into rows

        for blk in blocks:
            shifts = blk["shifts"]
            masks = _ld(c_ref, blk["masks"])    # (NL, K) 0/1 per-tap boundary masks
            w1 = _ld(c_ref, blk["w1"])          # (K*Cin,  Cout)  im2col-packed taps
            b1 = _ld(c_ref, blk["b1"])          # (1, Cout)
            w2 = _ld(c_ref, blk["w2"])          # (K*Cout, Cout)
            b2 = _ld(c_ref, blk["b2"])          # (1, Cout)

            def conv(inp, w, b):
                # Dilated "same" conv: per-tap sublane roll (XLU) + 0/1 mask (VPU),
                # lane-concat to an im2col slab, then ONE MXU matmul for all K taps.
                cols = []
                for t, s in enumerate(shifts):
                    if s == 0:
                        cols.append(inp)
                    else:
                        rolled = pltpu.roll(inp, shift=(-s) % NL, axis=0)
                        cols.append(rolled * masks[:, t:t + 1])
                xk = cols[0] if len(cols) == 1 else jnp.concatenate(cols, axis=1)
                return jnp.dot(xk, w, preferred_element_type=jnp.float32) + b

            c1 = jnp.maximum(conv(h, w1, b1), 0.0)   # conv1 + ReLU (Dropout = id, eval)
            c2 = jnp.maximum(conv(c1, w2, b2), 0.0)  # conv2 + ReLU (Dropout = id, eval)
            if blk["has_ds"]:
                wd = _ld(c_ref, blk["wd"])           # (Cin, Cout) 1x1 downsample
                bd = _ld(c_ref, blk["bd"])
                res = jnp.dot(h, wd, preferred_element_type=jnp.float32) + bd
            else:
                res = h
            h = jnp.maximum(c2 + res, 0.0)           # residual add + block ReLU

        # ---- head: mean over time -> fc -> softmax (fused epilogue) ----
        s_mat = _ld(c_ref, head["S"])                # (N, NL) rows of 1/L (avoids reshape)
        fcw = _ld(c_ref, head["fc_w"])               # (C_last, O)
        fcb = _ld(c_ref, head["fc_b"])               # (1, O)

        m = jnp.dot(s_mat, h, preferred_element_type=jnp.float32)           # (N, C)
        logits = jnp.dot(m, fcw, preferred_element_type=jnp.float32) + fcb  # (N, O)
        z = logits - jnp.max(logits, axis=-1, keepdims=True)
        e = jnp.exp(z)
        o_ref[...] = (e / jnp.sum(e, axis=-1, keepdims=True)).astype(o_ref.dtype)

    return kernel


def tcn_forward_pallas(packed, x_ncl):
    """x_ncl: (N, C_in, L) exactly like the PyTorch Conv1d input.  One pallas_call."""
    N, C0, L = x_ncl.shape
    NL = N * L
    # Boundary glue only: NCL -> channels-last and fold batch into the matmul M dim.
    xf = jnp.transpose(x_ncl, (0, 2, 1)).reshape(NL, C0).astype(jnp.float32)

    kernel = _make_fused_tcn_kernel(packed["meta"])
    num_classes = packed["num_classes"]

    # No grid (single-invocation kernel): inputs/outputs are whole-array VMEM blocks,
    # exactly 2 input DMAs (activations + packed constants) and 1 tiny output store.
    # seq_len <= 40 here, so the PyTorch forward skips MaxPool1d entirely.
    # TODO(synk): the data-dependent seq_len > 40 MaxPool1d branch is not exercised at
    # these shapes (it would be a windowed max reduction before the mean).
    return pl.pallas_call(
        kernel,
        out_shape=jax.ShapeDtypeStruct((N, num_classes), jnp.float32),
    )(xf, packed["const"])


# --------------------------- parameters (PyTorch layout) -------------------------- #

def init_tcn_params(key, num_inputs, num_channels, num_classes, kernel_size):
    """Deterministic synthetic init mirroring the PyTorch module's shapes (OIK layout)."""
    blocks = []
    c_in = num_inputs
    for i, c_out in enumerate(num_channels):
        key, k1, k2, k3, k4, k5, k6 = jax.random.split(key, 7)
        s1 = 1.0 / (c_in * kernel_size) ** 0.5
        s2 = 1.0 / (c_out * kernel_size) ** 0.5
        blk = {
            "w1": jax.random.uniform(k1, (c_out, c_in, kernel_size), jnp.float32, -s1, s1),
            "b1": jax.random.uniform(k2, (c_out,), jnp.float32, -s1, s1),
            "w2": jax.random.uniform(k3, (c_out, c_out, kernel_size), jnp.float32, -s2, s2),
            "b2": jax.random.uniform(k4, (c_out,), jnp.float32, -s2, s2),
            "dilation": 2 ** i,
        }
        if c_in != c_out:  # downsample 1x1 conv
            sd = 1.0 / c_in ** 0.5
            blk["wd"] = jax.random.uniform(k5, (c_out, c_in, 1), jnp.float32, -sd, sd)
            blk["bd"] = jax.random.uniform(k6, (c_out,), jnp.float32, -sd, sd)
        blocks.append(blk)
        c_in = c_out
    key, kf1, kf2 = jax.random.split(key, 3)
    sf = 1.0 / c_in ** 0.5
    return {
        "blocks": blocks,
        "fc_w": jax.random.uniform(kf1, (num_classes, c_in), jnp.float32, -sf, sf),
        "fc_b": jax.random.uniform(kf2, (num_classes,), jnp.float32, -sf, sf),
        "kernel_size": kernel_size,
    }


def pack_params_for_kernel(params, N, L):
    """One-time repack: weight transposes, im2col tap packing, per-tap boundary masks,
    mean matrix and fc — all coalesced into ONE lane-dense (rows, 128) f32 buffer."""
    K = params["kernel_size"]
    NL = N * L
    chunks = []
    cursor = 0

    def put(a):
        nonlocal cursor
        a = np.asarray(a, np.float32)
        if a.ndim == 1:
            a = a.reshape(1, -1)
        r, c = a.shape
        assert c <= _LANES, "constant wider than one lane group; widen packing scheme"
        pr = -(-r // _SUBLANES) * _SUBLANES            # sublane-align every slot
        buf = np.zeros((pr, _LANES), np.float32)
        buf[:r, :c] = a
        chunks.append(buf)
        entry = (cursor, r, c)
        cursor += pr
        return entry

    blocks_meta = []
    for blk in params["blocks"]:
        d = blk["dilation"]
        pad = (K - 1) * d // 2
        # "same" conv must keep the sequence length so the residual add is well-defined.
        assert L + 2 * pad - d * (K - 1) == L, "kernel_size/dilation must preserve seq length"
        shifts = [t * d - pad for t in range(K)]

        # mask[r, t] = 1 iff row r's source (r + shift_t) stays inside the same batch
        # element — this implements the symmetric zero padding exactly (roll wraparound
        # rows are always masked to zero).
        l_idx = np.arange(NL) % L
        masks = np.stack(
            [((l_idx + s >= 0) & (l_idx + s < L)).astype(np.float32) for s in shifts],
            axis=1)

        c_in = blk["w1"].shape[1]
        c_out = blk["w1"].shape[0]
        entry = {
            "shifts": shifts,
            "has_ds": "wd" in blk,
            "masks": put(masks),                                            # (NL, K)
            "w1": put(np.transpose(np.asarray(blk["w1"]), (2, 1, 0)).reshape(K * c_in, c_out)),
            "b1": put(blk["b1"]),
            "w2": put(np.transpose(np.asarray(blk["w2"]), (2, 1, 0)).reshape(K * c_out, c_out)),
            "b2": put(blk["b2"]),
        }
        if "wd" in blk:
            entry["wd"] = put(np.transpose(np.asarray(blk["wd"])[:, :, 0]))  # (Cin, Cout)
            entry["bd"] = put(blk["bd"])
        blocks_meta.append(entry)

    # mean-over-time selection matrix: m = S @ h_flat, S[n, n*L:(n+1)*L] = 1/L
    S = np.zeros((N, NL), np.float32)
    for n in range(N):
        S[n, n * L:(n + 1) * L] = 1.0 / L

    head = {
        "S": put(S),
        "fc_w": put(np.transpose(np.asarray(params["fc_w"]))),              # (C_last, O)
        "fc_b": put(params["fc_b"]),
    }

    const = jnp.asarray(np.concatenate(chunks, axis=0))                     # (rows, 128)
    return {
        "const": const,
        "meta": {"NL": NL, "blocks": blocks_meta, "head": head},
        "num_classes": int(params["fc_w"].shape[0]),
    }


# --------------------------------- pure-JAX ref ---------------------------------- #

def tcn_forward_ref(params, x_ncl):
    k = params["kernel_size"]
    x = x_ncl.astype(jnp.float32)

    def conv(x, w, b, d, pad):
        out = lax.conv_general_dilated(
            x, w, window_strides=(1,), padding=[(pad, pad)], rhs_dilation=(d,),
            dimension_numbers=("NCH", "OIH", "NCH"))
        return out + b[None, :, None]

    for blk in params["blocks"]:
        d = blk["dilation"]
        pad = (k - 1) * d // 2
        h = jax.nn.relu(conv(x, blk["w1"], blk["b1"], d, pad))
        h = jax.nn.relu(conv(h, blk["w2"], blk["b2"], d, pad))
        res = conv(x, blk["wd"], blk["bd"], 1, 0) if "wd" in blk else x
        x = jax.nn.relu(h + res)
    pooled = jnp.mean(x, axis=-1)                            # (N, C)
    logits = pooled @ params["fc_w"].T + params["fc_b"]
    return jax.nn.softmax(logits, axis=-1)


# -------------------------------------- main -------------------------------------- #

if __name__ == "__main__":
    key = jax.random.PRNGKey(0)
    key, kx, kp = jax.random.split(key, 3)

    N, C_in, L = 2, 4, 16
    num_channels = [8, 8]          # block0: 4->8 (downsample), block1: 8->8 (identity res)
    num_classes = 7
    kernel_size = 3                # odd kernel => residual add is shape-consistent

    x = jax.random.normal(kx, (N, C_in, L), jnp.float32)
    params = init_tcn_params(kp, C_in, num_channels, num_classes, kernel_size)
    packed = pack_params_for_kernel(params, N, L)            # one-time repack (hoisted glue)

    out = tcn_forward_pallas(packed, x)
    out = jax.block_until_ready(out)

    ref = tcn_forward_ref(params, x)
    assert out.shape == (N, num_classes), out.shape
    assert bool(jnp.allclose(out, ref, atol=1e-5, rtol=1e-5)), (out, ref)

    print("KERNEL_OK")
</pallas_src>

<mosaic_0001>
module attributes {stable_mosaic.version = 11 : i64} {
  func.func @kernel(%arg0: memref<32x4xf32, #tpu.memory_space<vmem>>, %arg1: memref<224x128xf32, #tpu.memory_space<vmem>>, %arg2: memref<2x7xf32, #tpu.memory_space<vmem>>) attributes {dimension_semantics = [], scalar_prefetch = 0 : i64, scratch_operands = 0 : i64, tpu.core_type = #tpu.core_type<tc>} {
    %c0 = arith.constant 0 : index
    %c0_0 = arith.constant 0 : index
    %0 = vector.load %arg0[%c0, %c0_0] : memref<32x4xf32, #tpu.memory_space<vmem>>, vector<32x4xf32>
    %c0_1 = arith.constant 0 : index
    %c0_2 = arith.constant 0 : index
    %1 = vector.load %arg1[%c0_1, %c0_2] : memref<224x128xf32, #tpu.memory_space<vmem>>, vector<32x3xf32>
    %c32 = arith.constant 32 : index
    %c0_3 = arith.constant 0 : index
    %2 = vector.load %arg1[%c32, %c0_3] : memref<224x128xf32, #tpu.memory_space<vmem>>, vector<12x8xf32>
    %c48 = arith.constant 48 : index
    %c0_4 = arith.constant 0 : index
    %3 = vector.load %arg1[%c48, %c0_4] : memref<224x128xf32, #tpu.memory_space<vmem>>, vector<1x8xf32>
    %c56 = arith.constant 56 : index
    %c0_5 = arith.constant 0 : index
    %4 = vector.load %arg1[%c56, %c0_5] : memref<224x128xf32, #tpu.memory_space<vmem>>, vector<24x8xf32>
    %c80 = arith.constant 80 : index
    %c0_6 = arith.constant 0 : index
    %5 = vector.load %arg1[%c80, %c0_6] : memref<224x128xf32, #tpu.memory_space<vmem>>, vector<1x8xf32>
    %c1_i32 = arith.constant 1 : i32
    %6 = tpu.dynamic_rotate %0 by %c1_i32 dim 0 : vector<32x4xf32>, i32 -> vector<32x4xf32>
    %7 = vector.extract_strided_slice %1 {offsets = [0, 0], sizes = [32, 1], strides = [1, 1]} : vector<32x3xf32> to vector<32x1xf32>
    %8 = vector.broadcast %7 : vector<32x1xf32> to vector<32x4xf32>
    %9 = arith.mulf %6, %8 : vector<32x4xf32>
    %c31_i32 = arith.constant 31 : i32
    %10 = tpu.dynamic_rotate %0 by %c31_i32 dim 0 : vector<32x4xf32>, i32 -> vector<32x4xf32>
    %11 = vector.extract_strided_slice %1 {offsets = [0, 2], sizes = [32, 1], strides = [1, 1]} : vector<32x3xf32> to vector<32x1xf32>
    %12 = vector.broadcast %11 : vector<32x1xf32> to vector<32x4xf32>
    %13 = arith.mulf %10, %12 : vector<32x4xf32>
    %14 = tpu.concatenate %9, %0, %13 in 1 : vector<32x4xf32>, vector<32x4xf32>, vector<32x4xf32> -> vector<32x12xf32>
    %cst = arith.constant dense<0.000000e+00> : vector<32x8xf32>
    %15 = tpu.matmul %14, %2, %cst {dimension_numbers = #tpu.dot_dimension_numbers<[1], [0], [0], [1], [0, 0, 1, 1], [], []>} : vector<32x12xf32>, vector<12x8xf32>, vector<32x8xf32> -> vector<32x8xf32>
    %16 = vector.broadcast %3 : vector<1x8xf32> to vector<32x8xf32>
    %17 = arith.addf %15, %16 : vector<32x8xf32>
    %cst_7 = arith.constant 0.000000e+00 : f32
    %18 = vector.broadcast %cst_7 : f32 to vector<32x8xf32>
    %19 = arith.maximumf %17, %18 : vector<32x8xf32>
    %c1_i32_8 = arith.constant 1 : i32
    %20 = tpu.dynamic_rotate %19 by %c1_i32_8 dim 0 : vector<32x8xf32>, i32 -> vector<32x8xf32>
    %21 = vector.extract_strided_slice %1 {offsets = [0, 0], sizes = [32, 1], strides = [1, 1]} : vector<32x3xf32> to vector<32x1xf32>
    %22 = vector.broadcast %21 : vector<32x1xf32> to vector<32x8xf32>
    %23 = arith.mulf %20, %22 : vector<32x8xf32>
    %c31_i32_9 = arith.constant 31 : i32
    %24 = tpu.dynamic_rotate %19 by %c31_i32_9 dim 0 : vector<32x8xf32>, i32 -> vector<32x8xf32>
    %25 = vector.extract_strided_slice %1 {offsets = [0, 2], sizes = [32, 1], strides = [1, 1]} : vector<32x3xf32> to vector<32x1xf32>
    %26 = vector.broadcast %25 : vector<32x1xf32> to vector<32x8xf32>
    %27 = arith.mulf %24, %26 : vector<32x8xf32>
    %28 = tpu.concatenate %23, %19, %27 in 1 : vector<32x8xf32>, vector<32x8xf32>, vector<32x8xf32> -> vector<32x24xf32>
    %cst_10 = arith.constant dense<0.000000e+00> : vector<32x8xf32>
    %29 = tpu.matmul %28, %4, %cst_10 {dimension_numbers = #tpu.dot_dimension_numbers<[1], [0], [0], [1], [0, 0, 1, 1], [], []>} : vector<32x24xf32>, vector<24x8xf32>, vector<32x8xf32> -> vector<32x8xf32>
    %30 = vector.broadcast %5 : vector<1x8xf32> to vector<32x8xf32>
    %31 = arith.addf %29, %30 : vector<32x8xf32>
    %cst_11 = arith.constant 0.000000e+00 : f32
    %32 = vector.broadcast %cst_11 : f32 to vector<32x8xf32>
    %33 = arith.maximumf %31, %32 : vector<32x8xf32>
    %c88 = arith.constant 88 : index
    %c0_12 = arith.constant 0 : index
    %34 = vector.load %arg1[%c88, %c0_12] : memref<224x128xf32, #tpu.memory_space<vmem>>, vector<4x8xf32>
    %c96 = arith.constant 96 : index
    %c0_13 = arith.constant 0 : index
    %35 = vector.load %arg1[%c96, %c0_13] : memref<224x128xf32, #tpu.memory_space<vmem>>, vector<1x8xf32>
    %cst_14 = arith.constant dense<0.000000e+00> : vector<32x8xf32>
    %36 = tpu.matmul %0, %34, %cst_14 {dimension_numbers = #tpu.dot_dimension_numbers<[1], [0], [0], [1], [0, 0, 1, 1], [], []>} : vector<32x4xf32>, vector<4x8xf32>, vector<32x8xf32> -> vector<32x8xf32>
    %37 = vector.broadcast %35 : vector<1x8xf32> to vector<32x8xf32>
    %38 = arith.addf %36, %37 : vector<32x8xf32>
    %39 = arith.addf %33, %38 : vector<32x8xf32>
    %cst_15 = arith.constant 0.000000e+00 : f32
    %40 = vector.broadcast %cst_15 : f32 to vector<32x8xf32>
    %41 = arith.maximumf %39, %40 : vector<32x8xf32>
    %c104 = arith.constant 104 : index
    %c0_16 = arith.constant 0 : index
    %42 = vector.load %arg1[%c104, %c0_16] : memref<224x128xf32, #tpu.memory_space<vmem>>, vector<32x3xf32>
    %c136 = arith.constant 136 : index
    %c0_17 = arith.constant 0 : index
    %43 = vector.load %arg1[%c136, %c0_17] : memref<224x128xf32, #tpu.memory_space<vmem>>, vector<24x8xf32>
    %c160 = arith.constant 160 : index
    %c0_18 = arith.constant 0 : index
    %44 = vector.load %arg1[%c160, %c0_18] : memref<224x128xf32, #tpu.memory_space<vmem>>, vector<1x8xf32>
    %c168 = arith.constant 168 : index
    %c0_19 = arith.constant 0 : index
    %45 = vector.load %arg1[%c168, %c0_19] : memref<224x128xf32, #tpu.memory_space<vmem>>, vector<24x8xf32>
    %c192 = arith.constant 192 : index
    %c0_20 = arith.constant 0 : index
    %46 = vector.load %arg1[%c192, %c0_20] : memref<224x128xf32, #tpu.memory_space<vmem>>, vector<1x8xf32>
    %c2_i32 = arith.constant 2 : i32
    %47 = tpu.dynamic_rotate %41 by %c2_i32 dim 0 : vector<32x8xf32>, i32 -> vector<32x8xf32>
    %48 = vector.extract_strided_slice %42 {offsets = [0, 0], sizes = [32, 1], strides = [1, 1]} : vector<32x3xf32> to vector<32x1xf32>
    %49 = vector.broadcast %48 : vector<32x1xf32> to vector<32x8xf32>
    %50 = arith.mulf %47, %49 : vector<32x8xf32>
    %c30_i32 = arith.constant 30 : i32
    %51 = tpu.dynamic_rotate %41 by %c30_i32 dim 0 : vector<32x8xf32>, i32 -> vector<32x8xf32>
    %52 = vector.extract_strided_slice %42 {offsets = [0, 2], sizes = [32, 1], strides = [1, 1]} : vector<32x3xf32> to vector<32x1xf32>
    %53 = vector.broadcast %52 : vector<32x1xf32> to vector<32x8xf32>
    %54 = arith.mulf %51, %53 : vector<32x8xf32>
    %55 = tpu.concatenate %50, %41, %54 in 1 : vector<32x8xf32>, vector<32x8xf32>, vector<32x8xf32> -> vector<32x24xf32>
    %cst_21 = arith.constant dense<0.000000e+00> : vector<32x8xf32>
    %56 = tpu.matmul %55, %43, %cst_21 {dimension_numbers = #tpu.dot_dimension_numbers<[1], [0], [0], [1], [0, 0, 1, 1], [], []>} : vector<32x24xf32>, vector<24x8xf32>, vector<32x8xf32> -> vector<32x8xf32>
    %57 = vector.broadcast %44 : vector<1x8xf32> to vector<32x8xf32>
    %58 = arith.addf %56, %57 : vector<32x8xf32>
    %cst_22 = arith.constant 0.000000e+00 : f32
    %59 = vector.broadcast %cst_22 : f32 to vector<32x8xf32>
    %60 = arith.maximumf %58, %59 : vector<32x8xf32>
    %c2_i32_23 = arith.constant 2 : i32
    %61 = tpu.dynamic_rotate %60 by %c2_i32_23 dim 0 : vector<32x8xf32>, i32 -> vector<32x8xf32>
    %62 = vector.extract_strided_slice %42 {offsets = [0, 0], sizes = [32, 1], strides = [1, 1]} : vector<32x3xf32> to vector<32x1xf32>
    %63 = vector.broadcast %62 : vector<32x1xf32> to vector<32x8xf32>
    %64 = arith.mulf %61, %63 : vector<32x8xf32>
    %c30_i32_24 = arith.constant 30 : i32
    %65 = tpu.dynamic_rotate %60 by %c30_i32_24 dim 0 : vector<32x8xf32>, i32 -> vector<32x8xf32>
    %66 = vector.extract_strided_slice %42 {offsets = [0, 2], sizes = [32, 1], strides = [1, 1]} : vector<32x3xf32> to vector<32x1xf32>
    %67 = vector.broadcast %66 : vector<32x1xf32> to vector<32x8xf32>
    %68 = arith.mulf %65, %67 : vector<32x8xf32>
    %69 = tpu.concatenate %64, %60, %68 in 1 : vector<32x8xf32>, vector<32x8xf32>, vector<32x8xf32> -> vector<32x24xf32>
    %cst_25 = arith.constant dense<0.000000e+00> : vector<32x8xf32>
    %70 = tpu.matmul %69, %45, %cst_25 {dimension_numbers = #tpu.dot_dimension_numbers<[1], [0], [0], [1], [0, 0, 1, 1], [], []>} : vector<32x24xf32>, vector<24x8xf32>, vector<32x8xf32> -> vector<32x8xf32>
    %71 = vector.broadcast %46 : vector<1x8xf32> to vector<32x8xf32>
    %72 = arith.addf %70, %71 : vector<32x8xf32>
    %cst_26 = arith.constant 0.000000e+00 : f32
    %73 = vector.broadcast %cst_26 : f32 to vector<32x8xf32>
    %74 = arith.maximumf %72, %73 : vector<32x8xf32>
    %75 = arith.addf %74, %41 : vector<32x8xf32>
    %cst_27 = arith.constant 0.000000e+00 : f32
    %76 = vector.broadcast %cst_27 : f32 to vector<32x8xf32>
    %77 = arith.maximumf %75, %76 : vector<32x8xf32>
    %c200 = arith.constant 200 : index
    %c0_28 = arith.constant 0 : index
    %78 = vector.load %arg1[%c200, %c0_28] : memref<224x128xf32, #tpu.memory_space<vmem>>, vector<2x32xf32>
    %c208 = arith.constant 208 : index
    %c0_29 = arith.constant 0 : index
    %79 = vector.load %arg1[%c208, %c0_29] : memref<224x128xf32, #tpu.memory_space<vmem>>, vector<8x7xf32>
    %c216 = arith.constant 216 : index
    %c0_30 = arith.constant 0 : index
    %80 = vector.load %arg1[%c216, %c0_30] : memref<224x128xf32, #tpu.memory_space<vmem>>, vector<1x7xf32>
    %cst_31 = arith.constant dense<0.000000e+00> : vector<2x8xf32>
    %81 = tpu.matmul %78, %77, %cst_31 {dimension_numbers = #tpu.dot_dimension_numbers<[1], [0], [0], [1], [0, 0, 1, 1], [], []>} : vector<2x32xf32>, vector<32x8xf32>, vector<2x8xf32> -> vector<2x8xf32>
    %cst_32 = arith.constant dense<0.000000e+00> : vector<2x7xf32>
    %82 = tpu.matmul %81, %79, %cst_32 {dimension_numbers = #tpu.dot_dimension_numbers<[1], [0], [0], [1], [0, 0, 1, 1], [], []>} : vector<2x8xf32>, vector<8x7xf32>, vector<2x7xf32> -> vector<2x7xf32>
    %83 = vector.broadcast %80 : vector<1x7xf32> to vector<2x7xf32>
    %84 = arith.addf %82, %83 : vector<2x7xf32>
    %cst_33 = arith.constant dense<0xFF800000> : vector<2xf32>
    %85 = vector.multi_reduction <maximumf>, %84, %cst_33 [1] : vector<2x7xf32> to vector<2xf32>
    %86 = vector.shape_cast %85 : vector<2xf32> to vector<2x1xf32>
    %87 = vector.broadcast %86 : vector<2x1xf32> to vector<2x7xf32>
    %88 = arith.subf %84, %87 : vector<2x7xf32>
    %89 = math.exp %88 : vector<2x7xf32>
    %cst_34 = arith.constant dense<0.000000e+00> : vector<2xf32>
    %90 = vector.multi_reduction <add>, %89, %cst_34 [1] : vector<2x7xf32> to vector<2xf32>
    %91 = vector.shape_cast %90 : vector<2xf32> to vector<2x1xf32>
    %92 = vector.broadcast %91 : vector<2x1xf32> to vector<2x7xf32>
    %93 = arith.divf %89, %92 : vector<2x7xf32>
    %c0_35 = arith.constant 0 : index
    %c0_36 = arith.constant 0 : index
    %94 = vector.load %arg2[%c0_35, %c0_36] : memref<2x7xf32, #tpu.memory_space<vmem>>, vector<2x7xf32>
    tpu.vector_store %arg2[%c0_35, %c0_36], %93 {strides = array<i32>} : memref<2x7xf32, #tpu.memory_space<vmem>>, vector<2x7xf32>,
    return
  }
}

</mosaic_0001>

<llo_original>
// kernel: tpu_custom_call.1
$region0: #{tpu_custom_call.1}
  #allocation0 [shape = 'u32[]', space=smem, size = 0x4, offset = 0x4, fixed_abs, tag = 'smem constant byte address 0x4 - core index']
  #allocation1 [shape = 'u32[144,128]{1,0:T(1,128)}', space=vmem, size = 0x12000, scoped, tag = 'internal scratch']
  %s0 = inlined_call_operand.vmem [shape: f32[32,4], index: 0, kind: input, shape index: {}]
  %s1 = inlined_call_operand.hbm [shape: f32[224,128], index: 1, kind: input, shape index: {}]
  %s2 = inlined_call_operand.hbm [shape: f32[2,7], index: 2, kind: output, shape index: {}]
  %s3 = sld [smem:[#allocation0]]
  $region22: #{tpu_custom_call.1} parent=0
    _
  %s5 = ssub.s32 1, %s3
  %s6 = scalar_select 0, %s5, %s3
  $region1: #{tpu_custom_call.1} parent=0
    #allocation2 [shape = 'u8[114688]{0}', space=vmem, size = 0x1c000, scoped, tag = 'input window, operand 1, single buffered']
    #allocation3 [shape = 's32[1]{0}', space=sflag, size = 0x4, scoped, tag = 'scoped memory for tpu_custom_call.1']
    #allocation4 [shape = 's32[1]{0}', space=sflag, size = 0x4, scoped, tag = 'scoped memory for tpu_custom_call.1']
    #allocation5 [shape = 'u8[1024]{0}', space=vmem, size = 0x400, scoped, tag = 'output window, operand 0, single buffered']
    %7 = vsyncpa [#allocation3], 0
    %8 = vsyncpa [#allocation4], 0
    // Predicated region
    $region2: #{tpu_custom_call.1} parent=1 // pred_check
      _
    $region3: #{tpu_custom_call.1} parent=1 // pred_check_branch
      %10 = sbr.rel (0) target = $region5
    $region4: #{tpu_custom_call.1} parent=1 // pred_region
      _
    $region5: #{tpu_custom_call.1} parent=1 // pred_fallthru
      _
    // Predicated region
    $region6: #{tpu_custom_call.1} parent=1 // pred_check
      _
    $region7: #{tpu_custom_call.1} parent=1 // pred_check_branch
      %12 = sbr.rel (0) target = $region9
    $region8: #{tpu_custom_call.1} parent=1 // pred_region
      %s14 = ssub.s32 3584, 3584
      %15 = vsyncadd [#allocation3], %s14
      %s16 = sshll.u32 [#allocation2], 4
      %s17 = int_to_ptr.vmem [resolvable:$true] %s16
      %22 = dma.hbm_to_vmem [thread:$0]  %s1, 3584, %s17, [#allocation3], 128, 128, 8
    $region9: #{tpu_custom_call.1} parent=1 // pred_fallthru
      _
    // Predicated region
    $region10: #{tpu_custom_call.1} parent=1 // pred_check
      _
    $region11: #{tpu_custom_call.1} parent=1 // pred_check_branch
      %24 = sbr.rel (0) target = $region13
    $region12: #{tpu_custom_call.1} parent=1 // pred_region
      %25 = dma.done [#allocation3], 3584
    $region13: #{tpu_custom_call.1} parent=1 // pred_fallthru
      _
    %v26 = vld [vmem:[%s0] sm:$0xff]
    %v27 = vld [vmem:[%s0 + $0x8] sm:$0xff]
    %v28 = vld [vmem:[%s0 + $0x10] sm:$0xff]
    %v29 = vld [vmem:[%s0 + $0x18] sm:$0xff]
    %v30 = vld [vmem:[#allocation2] sm:$0xff]
    %v31 = vld [vmem:[#allocation2 + $0x8] sm:$0xff]
    %v32 = vld [vmem:[#allocation2 + $0x10] sm:$0xff]
    %v33 = vld [vmem:[#allocation2 + $0x18] sm:$0xff]
    %v34 = vld [vmem:[#allocation2 + $0x20] sm:$0xff]
    %v35 = vld [vmem:[#allocation2 + $0x28] sm:$0xf]
    %v36 = vld [vmem:[#allocation2 + $0x30] sm:$0x1]
    %v37 = vld [vmem:[#allocation2 + $0x38] sm:$0xff]
    %v38 = vld [vmem:[#allocation2 + $0x40] sm:$0xff]
    %v39 = vld [vmem:[#allocation2 + $0x48] sm:$0xff]
    %v40 = vld [vmem:[#allocation2 + $0x50] sm:$0x1]
    %v41 = vrot.slane %v26, 7
    %v42 = vrot.slane %v27, 7
    %v43 = vrot.slane %v28, 7
    %v44 = vrot.slane %v29, 7
    %v45 = vlaneseq
    %v46 = vshrl.u32 %v45, 7
    %vm47 = vcmp.lt.s32.totalorder %v46, 1
    %v48 = vsel %vm47, %v43, %v44
    %v49 = vsel %vm47, %v42, %v43
    %v50 = vsel %vm47, %v41, %v42
    %v51 = vsel %vm47, %v44, %v41
    %53 = vset.pattern.permute.xlu0 0
    %54 = vperm.xlu0 %53, %v30
    %v55 = vpop.permute.xlu0 %54
    %58 = vset.pattern.permute.xlu0 0
    %59 = vperm.xlu0 %58, %v31
    %v60 = vpop.permute.xlu0 %59
    %63 = vset.pattern.permute.xlu0 0
    %64 = vperm.xlu0 %63, %v32
    %v65 = vpop.permute.xlu0 %64
    %68 = vset.pattern.permute.xlu0 0
    %69 = vperm.xlu0 %68, %v33
    %v70 = vpop.permute.xlu0 %69
    %v72 = vmul.f32 %v51, %v55
    %v73 = vmul.f32 %v50, %v60
    %v74 = vmul.f32 %v49, %v65
    %v75 = vmul.f32 %v48, %v70
    %v76 = vrot.slane %v26, 1
    %v77 = vrot.slane %v27, 1
    %v78 = vrot.slane %v28, 1
    %v79 = vrot.slane %v29, 1
    %vm80 = vcmp.lt.s32.totalorder %v46, 7
    %v81 = vsel %vm80, %v78, %v79
    %v82 = vsel %vm80, %v77, %v78
    %v83 = vsel %vm80, %v76, %v77
    %v84 = vsel %vm80, %v79, %v76
    %85 = vset.pattern.permute.xlu0 2
    %86 = vperm.xlu0 %85, %v30
    %v87 = vpop.permute.xlu0 %86
    %89 = vset.pattern.permute.xlu0 2
    %90 = vperm.xlu0 %89, %v31
    %v91 = vpop.permute.xlu0 %90
    %93 = vset.pattern.permute.xlu0 2
    %94 = vperm.xlu0 %93, %v32
    %v95 = vpop.permute.xlu0 %94
    %97 = vset.pattern.permute.xlu0 2
    %98 = vperm.xlu0 %97, %v33
    %v99 = vpop.permute.xlu0 %98
    %v101 = vmul.f32 %v83, %v87
    %v102 = vmul.f32 %v82, %v91
    %v103 = vmul.f32 %v81, %v95
    %v104 = vmul.f32 %v84, %v99
    %109 = vrot.lane.b32.xlu0 %v26, 4
    %v110 = vpop.permute.xlu0 %109
    %111 = vrot.lane.b32.xlu0 %v27, 4
    %v112 = vpop.permute.xlu0 %111
    %113 = vrot.lane.b32.xlu0 %v28, 4
    %v114 = vpop.permute.xlu0 %113
    %115 = vrot.lane.b32.xlu0 %v29, 4
    %v116 = vpop.permute.xlu0 %115
    %125 = vrot.lane.b32.xlu0 %v101, 8
    %v126 = vpop.permute.xlu0 %125
    %127 = vrot.lane.b32.xlu0 %v102, 8
    %v128 = vpop.permute.xlu0 %127
    %129 = vrot.lane.b32.xlu0 %v103, 8
    %v130 = vpop.permute.xlu0 %129
    %131 = vrot.lane.b32.xlu0 %v104, 8
    %v132 = vpop.permute.xlu0 %131
    %vm137 = vcmask 31744
    %v138 = vsel %vm137, %v72, %v110
    %v139 = vsel %vm137, %v73, %v112
    %v140 = vsel %vm137, %v74, %v114
    %v141 = vsel %vm137, %v75, %v116
    %vm142 = vcmask 64512
    %v143 = vsel %vm142, %v138, %v126
    %v144 = vsel %vm142, %v139, %v128
    %v145 = vsel %vm142, %v140, %v130
    %v146 = vsel %vm142, %v141, %v132
    %v147 = vlaneseq
    %v148 = vshrl.u32 %v147, 7
    %v149 = vsub.s32 0, %v148
    %v150 = vrot.slane %v36, %v149
    %vm151 = vcmask 97280
    %v153 = vsel %vm151, %v143, 0
    %v156 = vsel %vm151, %v144, 0
    %v159 = vsel %vm151, %v145, 0
    %v162 = vsel %vm151, %v146, 0
    %vm164 = vcmask 1043456
    %v166 = vsel %vm164, %v35, 0
    %168 = vmatprep.subr.mxu0 0.0
    %169 = vmatpush1.msra.mxu0 0.0
    %170 = vmatprep.subr.mxu0 0.0
    %171 = vmatpush1.msra.mxu0 0.0
    %172 = vmatprep.subr.mxu0 0.0
    %173 = vmatpush1.msra.mxu0 0.0
    %174 = vmatprep.subr.mxu0 0.0
    %175 = vmatpush1.msra.mxu0 0.0
    %176 = vmatprep.subr.mxu0 0.0
    %177 = vmatpush1.msra.mxu0 0.0
    %178 = vmatprep.subr.mxu0 0.0
    %179 = vmatpush1.msra.mxu0 0.0
    %180 = vmatprep.subr.mxu0 0.0
    %181 = vmatpush1.msra.mxu0 0.0
    %182 = vmatprep.subr.mxu0 0.0
    %183 = vmatpush1.msra.mxu0 0.0
    %184 = vmatprep.subr.mxu0 0.0
    %185 = vmatpush1.msra.mxu0 0.0
    %186 = vmatprep.subr.mxu0 0.0
    %187 = vmatpush1.msra.mxu0 0.0
    %188 = vmatprep.subr.mxu0 0.0
    %189 = vmatpush1.msra.mxu0 0.0
    %190 = vmatprep.subr.mxu0 0.0
    %191 = vmatpush1.msra.mxu0 0.0
    %192 = vmatprep.subr.mxu0 0.0
    %193 = vmatpush1.msra.mxu0 0.0
    %194 = vmatprep.subr.mxu0 0.0
    %195 = vmatpush1.msra.mxu0 0.0
    %196 = vmatprep.subr.mxu0 0.0
    %197 = vmatpush1.msra.mxu0 %v166
    %198 = vmatprep.subr.mxu0 0.0
    %199 = vmatpush1.msra.mxu0 %v34
    %200 = vmatprep.subr.mxu0 0.0
    %201 = vmatpush2.msra.mxu0 0.0
    %202 = vmatprep.subr.mxu0 0.0
    %203 = vmatpush2.msra.mxu0 0.0
    %204 = vmatprep.subr.mxu0 0.0
    %205 = vmatpush2.msra.mxu0 0.0
    %206 = vmatprep.subr.mxu0 0.0
    %207 = vmatpush2.msra.mxu0 0.0
    %208 = vmatprep.subr.mxu0 0.0
    %209 = vmatpush2.msra.mxu0 0.0
    %210 = vmatprep.subr.mxu0 0.0
    %211 = vmatpush2.msra.mxu0 0.0
    %212 = vmatprep.subr.mxu0 0.0
    %213 = vmatpush2.msra.mxu0 0.0
    %214 = vmatprep.subr.mxu0 0.0
    %215 = vmatpush2.msra.mxu0 0.0
    %216 = vmatprep.subr.mxu0 0.0
    %217 = vmatpush2.msra.mxu0 0.0
    %218 = vmatprep.subr.mxu0 0.0
    %219 = vmatpush2.msra.mxu0 0.0
    %220 = vmatprep.subr.mxu0 0.0
    %221 = vmatpush2.msra.mxu0 0.0
    %222 = vmatprep.subr.mxu0 0.0
    %223 = vmatpush2.msra.mxu0 0.0
    %224 = vmatprep.subr.mxu0 0.0
    %225 = vmatpush2.msra.mxu0 0.0
    %226 = vmatprep.subr.mxu0 0.0
    %227 = vmatpush2.msra.mxu0 0.0
    %228 = vmatprep.subr.mxu0 0.0
    %229 = vmatpush2.msra.mxu0 0.0
    %230 = vmatprep.subr.mxu0 0.0
    %231 = vmatpush2.msra.mxu0 0.0
    %232 = vmatprep.mubr.f32.mxu0 0.0
    %233 = vmatmul.mubr.f32.gmra.mxu0 %v153
    %v234 = vpop.f32.mrf.mxu0
    %v235 = vadd.f32 %v150, %v234
    %v236 = vpop.f32.mrf.mxu0
    %237 = vmatprep.mubr.f32.mxu0 0.0
    %238 = vmatmul.mubr.f32.gmra.mxu0 %v156
    %v239 = vpop.f32.mrf.mxu0
    %v240 = vadd.f32 %v150, %v239
    %v241 = vpop.f32.mrf.mxu0
    %242 = vmatprep.mubr.f32.mxu0 0.0
    %243 = vmatmul.mubr.f32.gmra.mxu0 %v159
    %v244 = vpop.f32.mrf.mxu0
    %v245 = vadd.f32 %v150, %v244
    %v246 = vpop.f32.mrf.mxu0
    %247 = vmatprep.mubr.f32.mxu0 0.0
    %248 = vmatmul.mubr.f32.gmra.mxu0 %v162
    %v249 = vpop.f32.mrf.mxu0
    %v250 = vadd.f32 %v150, %v249
    %v251 = vpop.f32.mrf.mxu0
    %252 = vdwg.mxu0
    %v253 = vmax.f32 %v235, 0.0
    %v254 = vmax.f32 %v240, 0.0
    %v255 = vmax.f32 %v245, 0.0
    %v256 = vmax.f32 %v250, 0.0
    %v257 = vrot.slane %v253, 7
    %v258 = vrot.slane %v254, 7
    %v259 = vrot.slane %v255, 7
    %v260 = vrot.slane %v256, 7
    %v261 = vsel %vm47, %v259, %v260
    %v262 = vsel %vm47, %v258, %v259
    %v263 = vsel %vm47, %v257, %v258
    %v264 = vsel %vm47, %v260, %v257
    %v265 = vmul.f32 %v264, %v55
    %v266 = vmul.f32 %v263, %v60
    %v267 = vmul.f32 %v262, %v65
    %v268 = vmul.f32 %v261, %v70
    %v269 = vrot.slane %v253, 1
    %v270 = vrot.slane %v254, 1
    %v271 = vrot.slane %v255, 1
    %v272 = vrot.slane %v256, 1
    %v273 = vsel %vm80, %v271, %v272
    %v274 = vsel %vm80, %v270, %v271
    %v275 = vsel %vm80, %v269, %v270
    %v276 = vsel %vm80, %v272, %v269
    %v277 = vmul.f32 %v275, %v87
    %v278 = vmul.f32 %v274, %v91
    %v279 = vmul.f32 %v273, %v95
    %v280 = vmul.f32 %v276, %v99
    %285 = vrot.lane.b32.xlu0 %v253, 8
    %v286 = vpop.permute.xlu0 %285
    %287 = vrot.lane.b32.xlu0 %v254, 8
    %v288 = vpop.permute.xlu0 %287
    %289 = vrot.lane.b32.xlu0 %v255, 8
    %v290 = vpop.permute.xlu0 %289
    %291 = vrot.lane.b32.xlu0 %v256, 8
    %v292 = vpop.permute.xlu0 %291
    %301 = vrot.lane.b32.xlu0 %v277, 16
    %v302 = vpop.permute.xlu0 %301
    %303 = vrot.lane.b32.xlu0 %v278, 16
    %v304 = vpop.permute.xlu0 %303
    %305 = vrot.lane.b32.xlu0 %v279, 16
    %v306 = vpop.permute.xlu0 %305
    %307 = vrot.lane.b32.xlu0 %v280, 16
    %v308 = vpop.permute.xlu0 %307
    %v313 = vsel %vm142, %v265, %v286
    %v314 = vsel %vm142, %v266, %v288
    %v315 = vsel %vm142, %v267, %v290
    %v316 = vsel %vm142, %v268, %v292
    %vm317 = vcmask 130048
    %v318 = vsel %vm317, %v313, %v302
    %v319 = vsel %vm317, %v314, %v304
    %v320 = vsel %vm317, %v315, %v306
    %v321 = vsel %vm317, %v316, %v308
    %v322 = vlaneseq
    %v323 = vshrl.u32 %v322, 7
    %v324 = vsub.s32 0, %v323
    %v325 = vrot.slane %v40, %v324
    %vm326 = vcmask 195584
    %v328 = vsel %vm326, %v318, 0
    %v331 = vsel %vm326, %v319, 0
    %v334 = vsel %vm326, %v320, 0
    %v337 = vsel %vm326, %v321, 0
    %339 = vmatprep.subr.mxu0 0.0
    %340 = vmatpush1.msra.mxu0 0.0
    %341 = vmatprep.subr.mxu0 0.0
    %342 = vmatpush1.msra.mxu0 0.0
    %343 = vmatprep.subr.mxu0 0.0
    %344 = vmatpush1.msra.mxu0 0.0
    %345 = vmatprep.subr.mxu0 0.0
    %346 = vmatpush1.msra.mxu0 0.0
    %347 = vmatprep.subr.mxu0 0.0
    %348 = vmatpush1.msra.mxu0 0.0
    %349 = vmatprep.subr.mxu0 0.0
    %350 = vmatpush1.msra.mxu0 0.0
    %351 = vmatprep.subr.mxu0 0.0
    %352 = vmatpush1.msra.mxu0 0.0
    %353 = vmatprep.subr.mxu0 0.0
    %354 = vmatpush1.msra.mxu0 0.0
    %355 = vmatprep.subr.mxu0 0.0
    %356 = vmatpush1.msra.mxu0 0.0
    %357 = vmatprep.subr.mxu0 0.0
    %358 = vmatpush1.msra.mxu0 0.0
    %359 = vmatprep.subr.mxu0 0.0
    %360 = vmatpush1.msra.mxu0 0.0
    %361 = vmatprep.subr.mxu0 0.0
    %362 = vmatpush1.msra.mxu0 0.0
    %363 = vmatprep.subr.mxu0 0.0
    %364 = vmatpush1.msra.mxu0 0.0
    %365 = vmatprep.subr.mxu0 0.0
    %366 = vmatpush1.msra.mxu0 %v39
    %367 = vmatprep.subr.mxu0 0.0
    %368 = vmatpush1.msra.mxu0 %v38
    %369 = vmatprep.subr.mxu0 0.0
    %370 = vmatpush1.msra.mxu0 %v37
    %371 = vmatprep.subr.mxu0 0.0
    %372 = vmatpush2.msra.mxu0 0.0
    %373 = vmatprep.subr.mxu0 0.0
    %374 = vmatpush2.msra.mxu0 0.0
    %375 = vmatprep.subr.mxu0 0.0
    %376 = vmatpush2.msra.mxu0 0.0
    %377 = vmatprep.subr.mxu0 0.0
    %378 = vmatpush2.msra.mxu0 0.0
    %379 = vmatprep.subr.mxu0 0.0
    %380 = vmatpush2.msra.mxu0 0.0
    %381 = vmatprep.subr.mxu0 0.0
    %382 = vmatpush2.msra.mxu0 0.0
    %383 = vmatprep.subr.mxu0 0.0
    %384 = vmatpush2.msra.mxu0 0.0
    %385 = vmatprep.subr.mxu0 0.0
    %386 = vmatpush2.msra.mxu0 0.0
    %387 = vmatprep.subr.mxu0 0.0
    %388 = vmatpush2.msra.mxu0 0.0
    %389 = vmatprep.subr.mxu0 0.0
    %390 = vmatpush2.msra.mxu0 0.0
    %391 = vmatprep.subr.mxu0 0.0
    %392 = vmatpush2.msra.mxu0 0.0
    %393 = vmatprep.subr.mxu0 0.0
    %394 = vmatpush2.msra.mxu0 0.0
    %395 = vmatprep.subr.mxu0 0.0
    %396 = vmatpush2.msra.mxu0 0.0
    %397 = vmatprep.subr.mxu0 0.0
    %398 = vmatpush2.msra.mxu0 0.0
    %399 = vmatprep.subr.mxu0 0.0
    %400 = vmatpush2.msra.mxu0 0.0
    %401 = vmatprep.subr.mxu0 0.0
    %402 = vmatpush2.msra.mxu0 0.0
    %403 = vmatprep.mubr.f32.mxu0 0.0
    %404 = vmatmul.mubr.f32.gmra.mxu0 %v328
    %v405 = vpop.f32.mrf.mxu0
    %v406 = vadd.f32 %v325, %v405
    %v407 = vpop.f32.mrf.mxu0
    %408 = vmatprep.mubr.f32.mxu0 0.0
    %409 = vmatmul.mubr.f32.gmra.mxu0 %v331
    %v410 = vpop.f32.mrf.mxu0
    %v411 = vadd.f32 %v325, %v410
    %v412 = vpop.f32.mrf.mxu0
    %413 = vmatprep.mubr.f32.mxu0 0.0
    %414 = vmatmul.mubr.f32.gmra.mxu0 %v334
    %v415 = vpop.f32.mrf.mxu0
    %v416 = vadd.f32 %v325, %v415
    %v417 = vpop.f32.mrf.mxu0
    %418 = vmatprep.mubr.f32.mxu0 0.0
    %419 = vmatmul.mubr.f32.gmra.mxu0 %v337
    %v420 = vpop.f32.mrf.mxu0
    %v421 = vadd.f32 %v325, %v420
    %v422 = vpop.f32.mrf.mxu0
    %423 = vdwg.mxu0
    %v424 = vmax.f32 %v406, 0.0
    %v425 = vmax.f32 %v411, 0.0
    %v426 = vmax.f32 %v416, 0.0
    %v427 = vmax.f32 %v421, 0.0
    %v428 = vld [vmem:[#allocation2 + $0x58] sm:$0xf]
    %v429 = vld [vmem:[#allocation2 + $0x60] sm:$0x1]
    %v430 = vlaneseq
    %v431 = vshrl.u32 %v430, 7
    %v432 = vsub.s32 0, %v431
    %v433 = vrot.slane %v429, %v432
    %v434 = vsel %vm137, %v26, 0
    %v436 = vsel %vm137, %v27, 0
    %v438 = vsel %vm137, %v28, 0
    %v440 = vsel %vm137, %v29, 0
    %v443 = vsel %vm164, %v428, 0
    %445 = vmatprep.subr.mxu0 0.0
    %446 = vmatpush1.msra.mxu0 0.0
    %447 = vmatprep.subr.mxu0 0.0
    %448 = vmatpush1.msra.mxu0 0.0
    %449 = vmatprep.subr.mxu0 0.0
    %450 = vmatpush1.msra.mxu0 0.0
    %451 = vmatprep.subr.mxu0 0.0
    %452 = vmatpush1.msra.mxu0 0.0
    %453 = vmatprep.subr.mxu0 0.0
    %454 = vmatpush1.msra.mxu0 0.0
    %455 = vmatprep.subr.mxu0 0.0
    %456 = vmatpush1.msra.mxu0 0.0
    %457 = vmatprep.subr.mxu0 0.0
    %458 = vmatpush1.msra.mxu0 0.0
    %459 = vmatprep.subr.mxu0 0.0
    %460 = vmatpush1.msra.mxu0 0.0
    %461 = vmatprep.subr.mxu0 0.0
    %462 = vmatpush1.msra.mxu0 0.0
    %463 = vmatprep.subr.mxu0 0.0
    %464 = vmatpush1.msra.mxu0 0.0
    %465 = vmatprep.subr.mxu0 0.0
    %466 = vmatpush1.msra.mxu0 0.0
    %467 = vmatprep.subr.mxu0 0.0
    %468 = vmatpush1.msra.mxu0 0.0
    %469 = vmatprep.subr.mxu0 0.0
    %470 = vmatpush1.msra.mxu0 0.0
    %471 = vmatprep.subr.mxu0 0.0
    %472 = vmatpush1.msra.mxu0 0.0
    %473 = vmatprep.subr.mxu0 0.0
    %474 = vmatpush1.msra.mxu0 0.0
    %475 = vmatprep.subr.mxu0 0.0
    %476 = vmatpush1.msra.mxu0 %v443
    %477 = vmatprep.subr.mxu0 0.0
    %478 = vmatpush2.msra.mxu0 0.0
    %479 = vmatprep.subr.mxu0 0.0
    %480 = vmatpush2.msra.mxu0 0.0
    %481 = vmatprep.subr.mxu0 0.0
    %482 = vmatpush2.msra.mxu0 0.0
    %483 = vmatprep.subr.mxu0 0.0
    %484 = vmatpush2.msra.mxu0 0.0
    %485 = vmatprep.subr.mxu0 0.0
    %486 = vmatpush2.msra.mxu0 0.0
    %487 = vmatprep.subr.mxu0 0.0
    %488 = vmatpush2.msra.mxu0 0.0
    %489 = vmatprep.subr.mxu0 0.0
    %490 = vmatpush2.msra.mxu0 0.0
    %491 = vmatprep.subr.mxu0 0.0
    %492 = vmatpush2.msra.mxu0 0.0
    %493 = vmatprep.subr.mxu0 0.0
    %494 = vmatpush2.msra.mxu0 0.0
    %495 = vmatprep.subr.mxu0 0.0
    %496 = vmatpush2.msra.mxu0 0.0
    %497 = vmatprep.subr.mxu0 0.0
    %498 = vmatpush2.msra.mxu0 0.0
    %499 = vmatprep.subr.mxu0 0.0
    %500 = vmatpush2.msra.mxu0 0.0
    %501 = vmatprep.subr.mxu0 0.0
    %502 = vmatpush2.msra.mxu0 0.0
    %503 = vmatprep.subr.mxu0 0.0
    %504 = vmatpush2.msra.mxu0 0.0
    %505 = vmatprep.subr.mxu0 0.0
    %506 = vmatpush2.msra.mxu0 0.0
    %507 = vmatprep.subr.mxu0 0.0
    %508 = vmatpush2.msra.mxu0 0.0
    %509 = vmatprep.mubr.f32.mxu0 0.0
    %510 = vmatmul.mubr.f32.gmra.mxu0 %v434
    %v511 = vpop.f32.mrf.mxu0
    %v512 = vadd.f32 %v433, %v511
    %v513 = vpop.f32.mrf.mxu0
    %514 = vmatprep.mubr.f32.mxu0 0.0
    %515 = vmatmul.mubr.f32.gmra.mxu0 %v436
    %v516 = vpop.f32.mrf.mxu0
    %v517 = vadd.f32 %v433, %v516
    %v518 = vpop.f32.mrf.mxu0
    %519 = vmatprep.mubr.f32.mxu0 0.0
    %520 = vmatmul.mubr.f32.gmra.mxu0 %v438
    %v521 = vpop.f32.mrf.mxu0
    %v522 = vadd.f32 %v433, %v521
    %v523 = vpop.f32.mrf.mxu0
    %524 = vmatprep.mubr.f32.mxu0 0.0
    %525 = vmatmul.mubr.f32.gmra.mxu0 %v440
    %v526 = vpop.f32.mrf.mxu0
    %v527 = vadd.f32 %v433, %v526
    %v528 = vpop.f32.mrf.mxu0
    %529 = vdwg.mxu0
    %v530 = vadd.f32 %v424, %v512
    %v531 = vadd.f32 %v425, %v517
    %v532 = vadd.f32 %v426, %v522
    %v533 = vadd.f32 %v427, %v527
    %v534 = vmax.f32 %v530, 0.0
    %v535 = vmax.f32 %v531, 0.0
    %v536 = vmax.f32 %v532, 0.0
    %v537 = vmax.f32 %v533, 0.0
    %v538 = vld [vmem:[#allocation2 + $0x68] sm:$0xff]
    %v539 = vld [vmem:[#allocation2 + $0x70] sm:$0xff]
    %v540 = vld [vmem:[#allocation2 + $0x78] sm:$0xff]
    %v541 = vld [vmem:[#allocation2 + $0x80] sm:$0xff]
    %v542 = vld [vmem:[#allocation2 + $0x88] sm:$0xff]
    %v543 = vld [vmem:[#allocation2 + $0x90] sm:$0xff]
    %v544 = vld [vmem:[#allocation2 + $0x98] sm:$0xff]
    %v545 = vld [vmem:[#allocation2 + $0xa0] sm:$0x1]
    %v546 = vld [vmem:[#allocation2 + $0xa8] sm:$0xff]
    %v547 = vld [vmem:[#allocation2 + $0xb0] sm:$0xff]
    %v548 = vld [vmem:[#allocation2 + $0xb8] sm:$0xff]
    %v549 = vld [vmem:[#allocation2 + $0xc0] sm:$0x1]
    %v550 = vrot.slane %v534, 6
    %v551 = vrot.slane %v535, 6
    %v552 = vrot.slane %v536, 6
    %v553 = vrot.slane %v537, 6
    %vm554 = vcmp.lt.s32.totalorder %v46, 2
    %v555 = vsel %vm554, %v552, %v553
    %v556 = vsel %vm554, %v551, %v552
    %v557 = vsel %vm554, %v550, %v551
    %v558 = vsel %vm554, %v553, %v550
    %560 = vset.pattern.permute.xlu0 0
    %561 = vperm.xlu0 %560, %v538
    %v562 = vpop.permute.xlu0 %561
    %565 = vset.pattern.permute.xlu0 0
    %566 = vperm.xlu0 %565, %v539
    %v567 = vpop.permute.xlu0 %566
    %570 = vset.pattern.permute.xlu0 0
    %571 = vperm.xlu0 %570, %v540
    %v572 = vpop.permute.xlu0 %571
    %575 = vset.pattern.permute.xlu0 0
    %576 = vperm.xlu0 %575, %v541
    %v577 = vpop.permute.xlu0 %576
    %v579 = vmul.f32 %v558, %v562
    %v580 = vmul.f32 %v557, %v567
    %v581 = vmul.f32 %v556, %v572
    %v582 = vmul.f32 %v555, %v577
    %v583 = vrot.slane %v534, 2
    %v584 = vrot.slane %v535, 2
    %v585 = vrot.slane %v536, 2
    %v586 = vrot.slane %v537, 2
    %vm587 = vcmp.lt.s32.totalorder %v46, 6
    %v588 = vsel %vm587, %v585, %v586
    %v589 = vsel %vm587, %v584, %v585
    %v590 = vsel %vm587, %v583, %v584
    %v591 = vsel %vm587, %v586, %v583
    %592 = vset.pattern.permute.xlu0 2
    %593 = vperm.xlu0 %592, %v538
    %v594 = vpop.permute.xlu0 %593
    %596 = vset.pattern.permute.xlu0 2
    %597 = vperm.xlu0 %596, %v539
    %v598 = vpop.permute.xlu0 %597
    %600 = vset.pattern.permute.xlu0 2
    %601 = vperm.xlu0 %600, %v540
    %v602 = vpop.permute.xlu0 %601
    %604 = vset.pattern.permute.xlu0 2
    %605 = vperm.xlu0 %604, %v541
    %v606 = vpop.permute.xlu0 %605
    %v608 = vmul.f32 %v590, %v594
    %v609 = vmul.f32 %v589, %v598
    %v610 = vmul.f32 %v588, %v602
    %v611 = vmul.f32 %v591, %v606
    %616 = vrot.lane.b32.xlu0 %v534, 8
    %v617 = vpop.permute.xlu0 %616
    %618 = vrot.lane.b32.xlu0 %v535, 8
    %v619 = vpop.permute.xlu0 %618
    %620 = vrot.lane.b32.xlu0 %v536, 8
    %v621 = vpop.permute.xlu0 %620
    %622 = vrot.lane.b32.xlu0 %v537, 8
    %v623 = vpop.permute.xlu0 %622
    %632 = vrot.lane.b32.xlu0 %v608, 16
    %v633 = vpop.permute.xlu0 %632
    %634 = vrot.lane.b32.xlu0 %v609, 16
    %v635 = vpop.permute.xlu0 %634
    %636 = vrot.lane.b32.xlu0 %v610, 16
    %v637 = vpop.permute.xlu0 %636
    %638 = vrot.lane.b32.xlu0 %v611, 16
    %v639 = vpop.permute.xlu0 %638
    %v644 = vsel %vm142, %v579, %v617
    %v645 = vsel %vm142, %v580, %v619
    %v646 = vsel %vm142, %v581, %v621
    %v647 = vsel %vm142, %v582, %v623
    %v648 = vsel %vm317, %v644, %v633
    %v649 = vsel %vm317, %v645, %v635
    %v650 = vsel %vm317, %v646, %v637
    %v651 = vsel %vm317, %v647, %v639
    %v652 = vlaneseq
    %v653 = vshrl.u32 %v652, 7
    %v654 = vsub.s32 0, %v653
    %v655 = vrot.slane %v545, %v654
    %v657 = vsel %vm326, %v648, 0
    %v660 = vsel %vm326, %v649, 0
    %v663 = vsel %vm326, %v650, 0
    %v666 = vsel %vm326, %v651, 0
    %668 = vmatprep.subr.mxu0 0.0
    %669 = vmatpush1.msra.mxu0 0.0
    %670 = vmatprep.subr.mxu0 0.0
    %671 = vmatpush1.msra.mxu0 0.0
    %672 = vmatprep.subr.mxu0 0.0
    %673 = vmatpush1.msra.mxu0 0.0
    %674 = vmatprep.subr.mxu0 0.0
    %675 = vmatpush1.msra.mxu0 0.0
    %676 = vmatprep.subr.mxu0 0.0
    %677 = vmatpush1.msra.mxu0 0.0
    %678 = vmatprep.subr.mxu0 0.0
    %679 = vmatpush1.msra.mxu0 0.0
    %680 = vmatprep.subr.mxu0 0.0
    %681 = vmatpush1.msra.mxu0 0.0
    %682 = vmatprep.subr.mxu0 0.0
    %683 = vmatpush1.msra.mxu0 0.0
    %684 = vmatprep.subr.mxu0 0.0
    %685 = vmatpush1.msra.mxu0 0.0
    %686 = vmatprep.subr.mxu0 0.0
    %687 = vmatpush1.msra.mxu0 0.0
    %688 = vmatprep.subr.mxu0 0.0
    %689 = vmatpush1.msra.mxu0 0.0
    %690 = vmatprep.subr.mxu0 0.0
    %691 = vmatpush1.msra.mxu0 0.0
    %692 = vmatprep.subr.mxu0 0.0
    %693 = vmatpush1.msra.mxu0 0.0
    %694 = vmatprep.subr.mxu0 0.0
    %695 = vmatpush1.msra.mxu0 %v544
    %696 = vmatprep.subr.mxu0 0.0
    %697 = vmatpush1.msra.mxu0 %v543
    %698 = vmatprep.subr.mxu0 0.0
    %699 = vmatpush1.msra.mxu0 %v542
    %700 = vmatprep.subr.mxu0 0.0
    %701 = vmatpush2.msra.mxu0 0.0
    %702 = vmatprep.subr.mxu0 0.0
    %703 = vmatpush2.msra.mxu0 0.0
    %704 = vmatprep.subr.mxu0 0.0
    %705 = vmatpush2.msra.mxu0 0.0
    %706 = vmatprep.subr.mxu0 0.0
    %707 = vmatpush2.msra.mxu0 0.0
    %708 = vmatprep.subr.mxu0 0.0
    %709 = vmatpush2.msra.mxu0 0.0
    %710 = vmatprep.subr.mxu0 0.0
    %711 = vmatpush2.msra.mxu0 0.0
    %712 = vmatprep.subr.mxu0 0.0
    %713 = vmatpush2.msra.mxu0 0.0
    %714 = vmatprep.subr.mxu0 0.0
    %715 = vmatpush2.msra.mxu0 0.0
    %716 = vmatprep.subr.mxu0 0.0
    %717 = vmatpush2.msra.mxu0 0.0
    %718 = vmatprep.subr.mxu0 0.0
    %719 = vmatpush2.msra.mxu0 0.0
    %720 = vmatprep.subr.mxu0 0.0
    %721 = vmatpush2.msra.mxu0 0.0
    %722 = vmatprep.subr.mxu0 0.0
    %723 = vmatpush2.msra.mxu0 0.0
    %724 = vmatprep.subr.mxu0 0.0
    %725 = vmatpush2.msra.mxu0 0.0
    %726 = vmatprep.subr.mxu0 0.0
    %727 = vmatpush2.msra.mxu0 0.0
    %728 = vmatprep.subr.mxu0 0.0
    %729 = vmatpush2.msra.mxu0 0.0
    %730 = vmatprep.subr.mxu0 0.0
    %731 = vmatpush2.msra.mxu0 0.0
    %732 = vmatprep.mubr.f32.mxu0 0.0
    %733 = vmatmul.mubr.f32.gmra.mxu0 %v657
    %v734 = vpop.f32.mrf.mxu0
    %v735 = vadd.f32 %v655, %v734
    %v736 = vpop.f32.mrf.mxu0
    %737 = vmatprep.mubr.f32.mxu0 0.0
    %738 = vmatmul.mubr.f32.gmra.mxu0 %v660
    %v739 = vpop.f32.mrf.mxu0
    %v740 = vadd.f32 %v655, %v739
    %v741 = vpop.f32.mrf.mxu0
    %742 = vmatprep.mubr.f32.mxu0 0.0
    %743 = vmatmul.mubr.f32.gmra.mxu0 %v663
    %v744 = vpop.f32.mrf.mxu0
    %v745 = vadd.f32 %v655, %v744
    %v746 = vpop.f32.mrf.mxu0
    %747 = vmatprep.mubr.f32.mxu0 0.0
    %748 = vmatmul.mubr.f32.gmra.mxu0 %v666
    %v749 = vpop.f32.mrf.mxu0
    %v750 = vadd.f32 %v655, %v749
    %v751 = vpop.f32.mrf.mxu0
    %752 = vdwg.mxu0
    %v753 = vmax.f32 %v735, 0.0
    %v754 = vmax.f32 %v740, 0.0
    %v755 = vmax.f32 %v745, 0.0
    %v756 = vmax.f32 %v750, 0.0
    %v757 = vrot.slane %v753, 6
    %v758 = vrot.slane %v754, 6
    %v759 = vrot.slane %v755, 6
    %v760 = vrot.slane %v756, 6
    %v761 = vsel %vm554, %v759, %v760
    %v762 = vsel %vm554, %v758, %v759
    %v763 = vsel %vm554, %v757, %v758
    %v764 = vsel %vm554, %v760, %v757
    %v765 = vmul.f32 %v764, %v562
    %v766 = vmul.f32 %v763, %v567
    %v767 = vmul.f32 %v762, %v572
    %v768 = vmul.f32 %v761, %v577
    %v769 = vrot.slane %v753, 2
    %v770 = vrot.slane %v754, 2
    %v771 = vrot.slane %v755, 2
    %v772 = vrot.slane %v756, 2
    %v773 = vsel %vm587, %v771, %v772
    %v774 = vsel %vm587, %v770, %v771
    %v775 = vsel %vm587, %v769, %v770
    %v776 = vsel %vm587, %v772, %v769
    %v777 = vmul.f32 %v775, %v594
    %v778 = vmul.f32 %v774, %v598
    %v779 = vmul.f32 %v773, %v602
    %v780 = vmul.f32 %v776, %v606
    %785 = vrot.lane.b32.xlu0 %v753, 8
    %v786 = vpop.permute.xlu0 %785
    %787 = vrot.lane.b32.xlu0 %v754, 8
    %v788 = vpop.permute.xlu0 %787
    %789 = vrot.lane.b32.xlu0 %v755, 8
    %v790 = vpop.permute.xlu0 %789
    %791 = vrot.lane.b32.xlu0 %v756, 8
    %v792 = vpop.permute.xlu0 %791
    %801 = vrot.lane.b32.xlu0 %v777, 16
    %v802 = vpop.permute.xlu0 %801
    %803 = vrot.lane.b32.xlu0 %v778, 16
    %v804 = vpop.permute.xlu0 %803
    %805 = vrot.lane.b32.xlu0 %v779, 16
    %v806 = vpop.permute.xlu0 %805
    %807 = vrot.lane.b32.xlu0 %v780, 16
    %v808 = vpop.permute.xlu0 %807
    %v813 = vsel %vm142, %v765, %v786
    %v814 = vsel %vm142, %v766, %v788
    %v815 = vsel %vm142, %v767, %v790
    %v816 = vsel %vm142, %v768, %v792
    %v817 = vsel %vm317, %v813, %v802
    %v818 = vsel %vm317, %v814, %v804
    %v819 = vsel %vm317, %v815, %v806
    %v820 = vsel %vm317, %v816, %v808
    %v821 = vlaneseq
    %v822 = vshrl.u32 %v821, 7
    %v823 = vsub.s32 0, %v822
    %v824 = vrot.slane %v549, %v823
    %v826 = vsel %vm326, %v817, 0
    %v829 = vsel %vm326, %v818, 0
    %v832 = vsel %vm326, %v819, 0
    %v835 = vsel %vm326, %v820, 0
    %837 = vmatprep.subr.mxu0 0.0
    %838 = vmatpush1.msra.mxu0 0.0
    %839 = vmatprep.subr.mxu0 0.0
    %840 = vmatpush1.msra.mxu0 0.0
    %841 = vmatprep.subr.mxu0 0.0
    %842 = vmatpush1.msra.mxu0 0.0
    %843 = vmatprep.subr.mxu0 0.0
    %844 = vmatpush1.msra.mxu0 0.0
    %845 = vmatprep.subr.mxu0 0.0
    %846 = vmatpush1.msra.mxu0 0.0
    %847 = vmatprep.subr.mxu0 0.0
    %848 = vmatpush1.msra.mxu0 0.0
    %849 = vmatprep.subr.mxu0 0.0
    %850 = vmatpush1.msra.mxu0 0.0
    %851 = vmatprep.subr.mxu0 0.0
    %852 = vmatpush1.msra.mxu0 0.0
    %853 = vmatprep.subr.mxu0 0.0
    %854 = vmatpush1.msra.mxu0 0.0
    %855 = vmatprep.subr.mxu0 0.0
    %856 = vmatpush1.msra.mxu0 0.0
    %857 = vmatprep.subr.mxu0 0.0
    %858 = vmatpush1.msra.mxu0 0.0
    %859 = vmatprep.subr.mxu0 0.0
    %860 = vmatpush1.msra.mxu0 0.0
    %861 = vmatprep.subr.mxu0 0.0
    %862 = vmatpush1.msra.mxu0 0.0
    %863 = vmatprep.subr.mxu0 0.0
    %864 = vmatpush1.msra.mxu0 %v548
    %865 = vmatprep.subr.mxu0 0.0
    %866 = vmatpush1.msra.mxu0 %v547
    %867 = vmatprep.subr.mxu0 0.0
    %868 = vmatpush1.msra.mxu0 %v546
    %869 = vmatprep.subr.mxu0 0.0
    %870 = vmatpush2.msra.mxu0 0.0
    %871 = vmatprep.subr.mxu0 0.0
    %872 = vmatpush2.msra.mxu0 0.0
    %873 = vmatprep.subr.mxu0 0.0
    %874 = vmatpush2.msra.mxu0 0.0
    %875 = vmatprep.subr.mxu0 0.0
    %876 = vmatpush2.msra.mxu0 0.0
    %877 = vmatprep.subr.mxu0 0.0
    %878 = vmatpush2.msra.mxu0 0.0
    %879 = vmatprep.subr.mxu0 0.0
    %880 = vmatpush2.msra.mxu0 0.0
    %881 = vmatprep.subr.mxu0 0.0
    %882 = vmatpush2.msra.mxu0 0.0
    %883 = vmatprep.subr.mxu0 0.0
    %884 = vmatpush2.msra.mxu0 0.0
    %885 = vmatprep.subr.mxu0 0.0
    %886 = vmatpush2.msra.mxu0 0.0
    %887 = vmatprep.subr.mxu0 0.0
    %888 = vmatpush2.msra.mxu0 0.0
    %889 = vmatprep.subr.mxu0 0.0
    %890 = vmatpush2.msra.mxu0 0.0
    %891 = vmatprep.subr.mxu0 0.0
    %892 = vmatpush2.msra.mxu0 0.0
    %893 = vmatprep.subr.mxu0 0.0
    %894 = vmatpush2.msra.mxu0 0.0
    %895 = vmatprep.subr.mxu0 0.0
    %896 = vmatpush2.msra.mxu0 0.0
    %897 = vmatprep.subr.mxu0 0.0
    %898 = vmatpush2.msra.mxu0 0.0
    %899 = vmatprep.subr.mxu0 0.0
    %900 = vmatpush2.msra.mxu0 0.0
    %901 = vmatprep.mubr.f32.mxu0 0.0
    %902 = vmatmul.mubr.f32.gmra.mxu0 %v826
    %v903 = vpop.f32.mrf.mxu0
    %v904 = vadd.f32 %v824, %v903
    %v905 = vpop.f32.mrf.mxu0
    %906 = vmatprep.mubr.f32.mxu0 0.0
    %907 = vmatmul.mubr.f32.gmra.mxu0 %v829
    %v908 = vpop.f32.mrf.mxu0
    %v909 = vadd.f32 %v824, %v908
    %v910 = vpop.f32.mrf.mxu0
    %911 = vmatprep.mubr.f32.mxu0 0.0
    %912 = vmatmul.mubr.f32.gmra.mxu0 %v832
    %v913 = vpop.f32.mrf.mxu0
    %v914 = vadd.f32 %v824, %v913
    %v915 = vpop.f32.mrf.mxu0
    %916 = vmatprep.mubr.f32.mxu0 0.0
    %917 = vmatmul.mubr.f32.gmra.mxu0 %v835
    %v918 = vpop.f32.mrf.mxu0
    %v919 = vadd.f32 %v824, %v918
    %v920 = vpop.f32.mrf.mxu0
    %921 = vdwg.mxu0
    %v922 = vmax.f32 %v904, 0.0
    %v923 = vmax.f32 %v909, 0.0
    %v924 = vmax.f32 %v914, 0.0
    %v925 = vmax.f32 %v919, 0.0
    %v926 = vadd.f32 %v922, %v534
    %v927 = vadd.f32 %v923, %v535
    %v928 = vadd.f32 %v924, %v536
    %v929 = vadd.f32 %v925, %v537
    %v930 = vmax.f32 %v926, 0.0
    %v931 = vmax.f32 %v927, 0.0
    %v932 = vmax.f32 %v928, 0.0
    %v933 = vmax.f32 %v929, 0.0
    %v934 = vld [vmem:[#allocation2 + $0xc8] sm:$0x3]
    %v935 = vld [vmem:[#allocation2 + $0xd0] sm:$0xff]
    %v936 = vld [vmem:[#allocation2 + $0xd8] sm:$0x1]
    %vm937 = vcmask 261120
    %v939 = vsel %vm937, %v934, 0
    %941 = vmatprep.subr.mxu0 0.0
    %942 = vmatpush1.msra.mxu0 0.0
    %943 = vmatprep.subr.mxu0 0.0
    %944 = vmatpush1.msra.mxu0 0.0
    %945 = vmatprep.subr.mxu0 0.0
    %946 = vmatpush1.msra.mxu0 0.0
    %947 = vmatprep.subr.mxu0 0.0
    %948 = vmatpush1.msra.mxu0 0.0
    %949 = vmatprep.subr.mxu0 0.0
    %950 = vmatpush1.msra.mxu0 0.0
    %951 = vmatprep.subr.mxu0 0.0
    %952 = vmatpush1.msra.mxu0 0.0
    %953 = vmatprep.subr.mxu0 0.0
    %954 = vmatpush1.msra.mxu0 0.0
    %955 = vmatprep.subr.mxu0 0.0
    %956 = vmatpush1.msra.mxu0 0.0
    %957 = vmatprep.subr.mxu0 0.0
    %958 = vmatpush1.msra.mxu0 0.0
    %959 = vmatprep.subr.mxu0 0.0
    %960 = vmatpush1.msra.mxu0 0.0
    %961 = vmatprep.subr.mxu0 0.0
    %962 = vmatpush1.msra.mxu0 0.0
    %963 = vmatprep.subr.mxu0 0.0
    %964 = vmatpush1.msra.mxu0 0.0
    %965 = vmatprep.subr.mxu0 0.0
    %966 = vmatpush1.msra.mxu0 %v933
    %967 = vmatprep.subr.mxu0 0.0
    %968 = vmatpush1.msra.mxu0 %v932
    %969 = vmatprep.subr.mxu0 0.0
    %970 = vmatpush1.msra.mxu0 %v931
    %971 = vmatprep.subr.mxu0 0.0
    %972 = vmatpush1.msra.mxu0 %v930
    %973 = vmatprep.subr.mxu0 0.0
    %974 = vmatpush2.msra.mxu0 0.0
    %975 = vmatprep.subr.mxu0 0.0
    %976 = vmatpush2.msra.mxu0 0.0
    %977 = vmatprep.subr.mxu0 0.0
    %978 = vmatpush2.msra.mxu0 0.0
    %979 = vmatprep.subr.mxu0 0.0
    %980 = vmatpush2.msra.mxu0 0.0
    %981 = vmatprep.subr.mxu0 0.0
    %982 = vmatpush2.msra.mxu0 0.0
    %983 = vmatprep.subr.mxu0 0.0
    %984 = vmatpush2.msra.mxu0 0.0
    %985 = vmatprep.subr.mxu0 0.0
    %986 = vmatpush2.msra.mxu0 0.0
    %987 = vmatprep.subr.mxu0 0.0
    %988 = vmatpush2.msra.mxu0 0.0
    %989 = vmatprep.subr.mxu0 0.0
    %990 = vmatpush2.msra.mxu0 0.0
    %991 = vmatprep.subr.mxu0 0.0
    %992 = vmatpush2.msra.mxu0 0.0
    %993 = vmatprep.subr.mxu0 0.0
    %994 = vmatpush2.msra.mxu0 0.0
    %995 = vmatprep.subr.mxu0 0.0
    %996 = vmatpush2.msra.mxu0 0.0
    %997 = vmatprep.subr.mxu0 0.0
    %998 = vmatpush2.msra.mxu0 0.0
    %999 = vmatprep.subr.mxu0 0.0
    %1000 = vmatpush2.msra.mxu0 0.0
    %1001 = vmatprep.subr.mxu0 0.0
    %1002 = vmatpush2.msra.mxu0 0.0
    %1003 = vmatprep.subr.mxu0 0.0
    %1004 = vmatpush2.msra.mxu0 0.0
    %1005 = vmatprep.mubr.f32.mxu0 0.0
    %1006 = vmatmul.mubr.f32.gmra.mxu0 %v939
    %v1007 = vpop.f32.mrf.mxu0
    %v1008 = vadd.f32 0.0, %v1007
    %v1009 = vpop.f32.mrf.mxu0
    %1010 = vdwg.mxu0
    %v1011 = vlaneseq
    %v1012 = vshrl.u32 %v1011, 7
    %v1013 = vsub.s32 0, %v1012
    %v1014 = vrot.slane %v936, %v1013
    %v1016 = vsel %vm142, %v1008, 0
    %1018 = vmatprep.subr.mxu0 0.0
    %1019 = vmatpush1.msra.mxu0 0.0
    %1020 = vmatprep.subr.mxu0 0.0
    %1021 = vmatpush1.msra.mxu0 0.0
    %1022 = vmatprep.subr.mxu0 0.0
    %1023 = vmatpush1.msra.mxu0 0.0
    %1024 = vmatprep.subr.mxu0 0.0
    %1025 = vmatpush1.msra.mxu0 0.0
    %1026 = vmatprep.subr.mxu0 0.0
    %1027 = vmatpush1.msra.mxu0 0.0
    %1028 = vmatprep.subr.mxu0 0.0
    %1029 = vmatpush1.msra.mxu0 0.0
    %1030 = vmatprep.subr.mxu0 0.0
    %1031 = vmatpush1.msra.mxu0 0.0
    %1032 = vmatprep.subr.mxu0 0.0
    %1033 = vmatpush1.msra.mxu0 0.0
    %1034 = vmatprep.subr.mxu0 0.0
    %1035 = vmatpush1.msra.mxu0 0.0
    %1036 = vmatprep.subr.mxu0 0.0
    %1037 = vmatpush1.msra.mxu0 0.0
    %1038 = vmatprep.subr.mxu0 0.0
    %1039 = vmatpush1.msra.mxu0 0.0
    %1040 = vmatprep.subr.mxu0 0.0
    %1041 = vmatpush1.msra.mxu0 0.0
    %1042 = vmatprep.subr.mxu0 0.0
    %1043 = vmatpush1.msra.mxu0 0.0
    %1044 = vmatprep.subr.mxu0 0.0
    %1045 = vmatpush1.msra.mxu0 0.0
    %1046 = vmatprep.subr.mxu0 0.0
    %1047 = vmatpush1.msra.mxu0 0.0
    %1048 = vmatprep.subr.mxu0 0.0
    %1049 = vmatpush1.msra.mxu0 %v935
    %1050 = vmatprep.subr.mxu0 0.0
    %1051 = vmatpush2.msra.mxu0 0.0
    %1052 = vmatprep.subr.mxu0 0.0
    %1053 = vmatpush2.msra.mxu0 0.0
    %1054 = vmatprep.subr.mxu0 0.0
    %1055 = vmatpush2.msra.mxu0 0.0
    %1056 = vmatprep.subr.mxu0 0.0
    %1057 = vmatpush2.msra.mxu0 0.0
    %1058 = vmatprep.subr.mxu0 0.0
    %1059 = vmatpush2.msra.mxu0 0.0
    %1060 = vmatprep.subr.mxu0 0.0
    %1061 = vmatpush2.msra.mxu0 0.0
    %1062 = vmatprep.subr.mxu0 0.0
    %1063 = vmatpush2.msra.mxu0 0.0
    %1064 = vmatprep.subr.mxu0 0.0
    %1065 = vmatpush2.msra.mxu0 0.0
    %1066 = vmatprep.subr.mxu0 0.0
    %1067 = vmatpush2.msra.mxu0 0.0
    %1068 = vmatprep.subr.mxu0 0.0
    %1069 = vmatpush2.msra.mxu0 0.0
    %1070 = vmatprep.subr.mxu0 0.0
    %1071 = vmatpush2.msra.mxu0 0.0
    %1072 = vmatprep.subr.mxu0 0.0
    %1073 = vmatpush2.msra.mxu0 0.0
    %1074 = vmatprep.subr.mxu0 0.0
    %1075 = vmatpush2.msra.mxu0 0.0
    %1076 = vmatprep.subr.mxu0 0.0
    %1077 = vmatpush2.msra.mxu0 0.0
    %1078 = vmatprep.subr.mxu0 0.0
    %1079 = vmatpush2.msra.mxu0 0.0
    %1080 = vmatprep.subr.mxu0 0.0
    %1081 = vmatpush2.msra.mxu0 0.0
    %1082 = vmatprep.mubr.f32.mxu0 0.0
    %1083 = vmatmul.mubr.f32.gmra.mxu0 %v1016
    %v1084 = vpop.f32.mrf.mxu0
    %v1085 = vadd.f32 %v1014, %v1084
    %v1086 = vpop.f32.mrf.mxu0
    %1087 = vdwg.mxu0
    %vm1088 = vcmask 50176
    %v1089 = vsel %vm1088, %v1085, -inf
    %1090 = vmax.xlane.f32.xlu0 %v1089
    %v1091 = vpop.xlane.xlu0 %1090
    %v1092 = vsub.f32 %v1085, %v1091
    %v1093 = vmul.f32 %v1092, 1.442695
    %v1094 = vpow.pop %v1093
    %v1095 = vsel %vm1088, %v1094, 0.0
    %1096 = vadd.xlane.f32.xlu0 %v1095
    %v1097 = vpop.xlane.xlu0 %1096
    %v1098 = vrcp.pop %v1097
    %v1099 = vmul.f32 %v1094, %v1098
    %1100 = vst.msk [vmem:[#allocation5] sm:$0x3] %vm1088, %v1099
    // Predicated region
    $region14: #{tpu_custom_call.1} parent=1 // pred_check
      _
    $region15: #{tpu_custom_call.1} parent=1 // pred_check_branch
      %1102 = sbr.rel (0) target = $region17
    $region16: #{tpu_custom_call.1} parent=1 // pred_region
      %s1104 = ssub.s32 32, 32
      %1105 = vsyncadd [#allocation4], %s1104
      %s1107 = sshll.u32 [#allocation5], 4
      %s1108 = int_to_ptr.vmem [resolvable:$true] %s1107
      %1110 = dma.vmem_to_hbm [thread:$0]  %s1108, 32, %s2, [#allocation4]
    $region17: #{tpu_custom_call.1} parent=1 // pred_fallthru
      _
    // Predicated region
    $region18: #{tpu_custom_call.1} parent=1 // pred_check
      _
    $region19: #{tpu_custom_call.1} parent=1 // pred_check_branch
      %1112 = sbr.rel (0) target = $region21
    $region20: #{tpu_custom_call.1} parent=1 // pred_region
      %1113 = dma.done [#allocation4], 32
    $region21: #{tpu_custom_call.1} parent=1 // pred_fallthru
      _
    %1114 = vsyncpa [#allocation3], 1
    %1115 = vsyncpa [#allocation4], 1

</llo_original>
